<compile_context>
chip_gen: v7x
topology: tpu7x:2x2x1
jax: 0.10.0
libtpu: 0.0.40
codegen_flags: <defaults>
</compile_context>

<pallas_src>
import functools

import jax
import jax.numpy as jnp
import numpy as np
from jax.experimental import pallas as pl
from jax.experimental.pallas import tpu as pltpu  # noqa: F401  (TPU backend)


def _ensemble_sample_kernel(x_ref, w_ref, b_ref, noise_ref, out_ref, *, d_out):
    # x     : [E, B, Din]
    # w     : [E, Din, 2*Dout]   (mean | logvar heads, fused)
    # b     : [E, 2*Dout]
    # noise : [E, B, Dout]       standard-normal draws
    # out   : [E, B, Dout]       sample = mean + exp(0.5*logvar) * noise
    ml = jnp.einsum("ebi,eio->ebo", x_ref[...], w_ref[...],
                    preferred_element_type=jnp.float32)
    ml = ml + b_ref[...][:, None, :]
    mean = ml[..., :d_out]
    std = jnp.exp(0.5 * ml[..., d_out:])
    out_ref[...] = (mean + std * noise_ref[...]).astype(out_ref.dtype)


def _ensemble_mean_kernel(x_ref, w_ref, b_ref, out_ref):
    # deterministic path: sample() == (forward(x)[0],) == (means,)
    mean = jnp.einsum("ebi,eio->ebo", x_ref[...], w_ref[...],
                      preferred_element_type=jnp.float32)
    out_ref[...] = (mean + b_ref[...][:, None, :]).astype(out_ref.dtype)


def ensemble_sample(x, w_mean, b_mean, w_logvar, b_logvar, key=None, *,
                    deterministic: bool = False):
    """Fused Ensemble.sample(): returns (sample,) or (means,) if deterministic."""
    E, B, Din = x.shape
    Dout = w_mean.shape[-1]
    b_mean = b_mean.reshape(E, Dout)
    b_logvar = b_logvar.reshape(E, Dout)

    out_shape = jax.ShapeDtypeStruct((E, B, Dout), jnp.float32)
    spec3 = lambda d0, d1, d2: pl.BlockSpec((d0, d1, d2), lambda i: (0, 0, 0))
    spec2 = lambda d0, d1: pl.BlockSpec((d0, d1), lambda i: (0, 0))

    if deterministic:
        mean = pl.pallas_call(
            _ensemble_mean_kernel,
            out_shape=out_shape,
            grid=(1,),
            in_specs=[
                spec3(E, B, Din),
                spec3(E, Din, Dout),
                spec2(E, Dout),
            ],
            out_specs=spec3(E, B, Dout),
        )(x, w_mean, b_mean)
        return (mean,)

    if key is None:
        key = jax.random.PRNGKey(0)
    noise = jax.random.normal(key, (E, B, Dout), dtype=jnp.float32)

    # Fuse the two heads: one [Din, 2*Dout] matmul per member.
    w = jnp.concatenate([w_mean, w_logvar], axis=-1)   # [E, Din, 2*Dout]
    b = jnp.concatenate([b_mean, b_logvar], axis=-1)   # [E, 2*Dout]

    sample = pl.pallas_call(
        functools.partial(_ensemble_sample_kernel, d_out=Dout),
        out_shape=out_shape,
        grid=(1,),
        in_specs=[
            spec3(E, B, Din),
            spec3(E, Din, 2 * Dout),
            spec2(E, 2 * Dout),
            spec3(E, B, Dout),
        ],
        out_specs=spec3(E, B, Dout),
    )(x, w, b, noise)
    return (sample,)


if __name__ == "__main__":
    # Small shapes implied by the ensemble forward: E members, batch, in/out dims.
    E, B, D_IN, D_OUT = 4, 8, 32, 128

    key = jax.random.PRNGKey(0)
    kx, kwm, kbm, kwl, kbl, ksample = jax.random.split(key, 6)

    x        = jax.random.normal(kx,  (E, B, D_IN),     dtype=jnp.float32)
    w_mean   = jax.random.normal(kwm, (E, D_IN, D_OUT), dtype=jnp.float32) * 0.05
    b_mean   = jax.random.normal(kbm, (E, D_OUT),       dtype=jnp.float32) * 0.05
    w_logvar = jax.random.normal(kwl, (E, D_IN, D_OUT), dtype=jnp.float32) * 0.05
    b_logvar = jax.random.normal(kbl, (E, D_OUT),       dtype=jnp.float32) * 0.05 - 1.0

    (sample,) = ensemble_sample(x, w_mean, b_mean, w_logvar, b_logvar, ksample)
    (mean_det,) = ensemble_sample(x, w_mean, b_mean, w_logvar, b_logvar,
                                  deterministic=True)
    jax.block_until_ready((sample, mean_det))

    # Pure-JAX reference (noise re-derived from the same key/shape/dtype).
    mean_ref   = jnp.einsum("ebi,eio->ebo", x, w_mean)   + b_mean[:, None, :]
    logvar_ref = jnp.einsum("ebi,eio->ebo", x, w_logvar) + b_logvar[:, None, :]
    noise_ref  = jax.random.normal(ksample, (E, B, D_OUT), dtype=jnp.float32)
    sample_ref = mean_ref + jnp.exp(0.5 * logvar_ref) * noise_ref

    np.testing.assert_allclose(np.asarray(mean_det), np.asarray(mean_ref),
                               rtol=1e-5, atol=1e-5)
    np.testing.assert_allclose(np.asarray(sample), np.asarray(sample_ref),
                               rtol=1e-4, atol=1e-4)
    assert sample.shape == (E, B, D_OUT)
    assert bool(jnp.all(jnp.isfinite(sample)))

    print("KERNEL_OK")
</pallas_src>

<mosaic_0001>
module attributes {stable_mosaic.version = 11 : i64} {
  func.func @_ensemble_sample_kernel(%arg0: i32, %arg1: memref<4x8x32xf32, #tpu.memory_space<vmem>>, %arg2: memref<4x32x256xf32, #tpu.memory_space<vmem>>, %arg3: memref<4x256xf32, #tpu.memory_space<vmem>>, %arg4: memref<4x8x128xf32, #tpu.memory_space<vmem>>, %arg5: memref<4x8x128xf32, #tpu.memory_space<vmem>>) attributes {dimension_semantics = [#tpu.dimension_semantics<arbitrary>], iteration_bounds = array<i64: 1>, scalar_prefetch = 0 : i64, scratch_operands = 0 : i64, tpu.core_type = #tpu.core_type<tc>, window_params = [{pipeline_mode = #tpu.pipeline_mode<synchronous>, transform_indices = @transform_0, window_bounds = array<i64: 4, 8, 32>}, {pipeline_mode = #tpu.pipeline_mode<synchronous>, transform_indices = @transform_1, window_bounds = array<i64: 4, 32, 256>}, {pipeline_mode = #tpu.pipeline_mode<synchronous>, transform_indices = @transform_2, window_bounds = array<i64: 4, 256>}, {pipeline_mode = #tpu.pipeline_mode<synchronous>, transform_indices = @transform_3, window_bounds = array<i64: 4, 8, 128>}, {pipeline_mode = #tpu.pipeline_mode<synchronous>, transform_indices = @transform_4, window_bounds = array<i64: 4, 8, 128>}]} {
    %c0 = arith.constant 0 : index
    %c0_0 = arith.constant 0 : index
    %c0_1 = arith.constant 0 : index
    %0 = vector.load %arg1[%c0, %c0_0, %c0_1] : memref<4x8x32xf32, #tpu.memory_space<vmem>>, vector<4x8x32xf32>
    %c0_2 = arith.constant 0 : index
    %c0_3 = arith.constant 0 : index
    %c0_4 = arith.constant 0 : index
    %1 = vector.load %arg2[%c0_2, %c0_3, %c0_4] : memref<4x32x256xf32, #tpu.memory_space<vmem>>, vector<4x32x256xf32>
    "tpu.trace_start"() <{level = 10 : i32, message = "ebi,eio->ebo"}> : () -> ()
    %cst = arith.constant dense<0.000000e+00> : vector<4x8x256xf32>
    %2 = tpu.matmul %0, %1, %cst {dimension_numbers = #tpu.dot_dimension_numbers<[2], [1], [1], [2], [0, 0, 0, 1, 1, 2], [0], [0]>} : vector<4x8x32xf32>, vector<4x32x256xf32>, vector<4x8x256xf32> -> vector<4x8x256xf32>
    "tpu.trace_stop"() : () -> ()
    %c0_5 = arith.constant 0 : index
    %c0_6 = arith.constant 0 : index
    %3 = vector.load %arg3[%c0_5, %c0_6] : memref<4x256xf32, #tpu.memory_space<vmem>>, vector<4x256xf32>
    %4 = vector.shape_cast %3 : vector<4x256xf32> to vector<4x1x256xf32>
    %5 = vector.broadcast %4 : vector<4x1x256xf32> to vector<4x8x256xf32>
    %6 = arith.addf %2, %5 : vector<4x8x256xf32>
    %7 = vector.extract_strided_slice %6 {offsets = [0, 0, 0], sizes = [4, 8, 128], strides = [1, 1, 1]} : vector<4x8x256xf32> to vector<4x8x128xf32>
    %8 = vector.extract_strided_slice %6 {offsets = [0, 0, 128], sizes = [4, 8, 128], strides = [1, 1, 1]} : vector<4x8x256xf32> to vector<4x8x128xf32>
    %cst_7 = arith.constant 5.000000e-01 : f32
    %9 = vector.broadcast %cst_7 : f32 to vector<4x8x128xf32>
    %10 = arith.mulf %9, %8 : vector<4x8x128xf32>
    %11 = math.exp %10 : vector<4x8x128xf32>
    %c0_8 = arith.constant 0 : index
    %c0_9 = arith.constant 0 : index
    %c0_10 = arith.constant 0 : index
    %12 = vector.load %arg4[%c0_8, %c0_9, %c0_10] : memref<4x8x128xf32, #tpu.memory_space<vmem>>, vector<4x8x128xf32>
    %13 = arith.mulf %11, %12 : vector<4x8x128xf32>
    %14 = arith.addf %7, %13 : vector<4x8x128xf32>
    %c0_11 = arith.constant 0 : index
    %c0_12 = arith.constant 0 : index
    %c0_13 = arith.constant 0 : index
    %15 = vector.load %arg5[%c0_11, %c0_12, %c0_13] : memref<4x8x128xf32, #tpu.memory_space<vmem>>, vector<4x8x128xf32>
    tpu.vector_store %arg5[%c0_11, %c0_12, %c0_13], %14 {strides = array<i32>} : memref<4x8x128xf32, #tpu.memory_space<vmem>>, vector<4x8x128xf32>,
    return
  }
  func.func @transform_0(%arg0: i32) -> (i32, i32, i32) {
    %c0_i32 = arith.constant 0 : i32
    %c0_i32_0 = arith.constant 0 : i32
    %c0_i32_1 = arith.constant 0 : i32
    %c0_i32_2 = arith.constant 0 : i32
    return %c0_i32, %c0_i32_0, %c0_i32_1 : i32, i32, i32
  }
  func.func @transform_1(%arg0: i32) -> (i32, i32, i32) {
    %c0_i32 = arith.constant 0 : i32
    %c0_i32_0 = arith.constant 0 : i32
    %c0_i32_1 = arith.constant 0 : i32
    %c0_i32_2 = arith.constant 0 : i32
    return %c0_i32, %c0_i32_0, %c0_i32_1 : i32, i32, i32
  }
  func.func @transform_2(%arg0: i32) -> (i32, i32) {
    %c0_i32 = arith.constant 0 : i32
    %c0_i32_0 = arith.constant 0 : i32
    %c0_i32_1 = arith.constant 0 : i32
    return %c0_i32, %c0_i32_0 : i32, i32
  }
  func.func @transform_3(%arg0: i32) -> (i32, i32, i32) {
    %c0_i32 = arith.constant 0 : i32
    %c0_i32_0 = arith.constant 0 : i32
    %c0_i32_1 = arith.constant 0 : i32
    %c0_i32_2 = arith.constant 0 : i32
    return %c0_i32, %c0_i32_0, %c0_i32_1 : i32, i32, i32
  }
  func.func @transform_4(%arg0: i32) -> (i32, i32, i32) {
    %c0_i32 = arith.constant 0 : i32
    %c0_i32_0 = arith.constant 0 : i32
    %c0_i32_1 = arith.constant 0 : i32
    %c0_i32_2 = arith.constant 0 : i32
    return %c0_i32, %c0_i32_0, %c0_i32_1 : i32, i32, i32
  }
}

</mosaic_0001>

<llo_original>
// kernel: tpu_custom_call.1
$region0: #{tpu_custom_call.1}
  #allocation0 [shape = 'u32[]', space=smem, size = 0x4, offset = 0x4, fixed_abs, tag = 'smem constant byte address 0x4 - core index']
  #allocation1 [shape = 'u32[144,128]{1,0:T(1,128)}', space=vmem, size = 0x12000, scoped, tag = 'internal scratch']
  %s0 = inlined_call_operand.hbm [shape: f32[4,8,32], index: 0, kind: input, shape index: {}]
  %s1 = inlined_call_operand.hbm [shape: f32[4,32,256], index: 1, kind: input, shape index: {}]
  %s2 = inlined_call_operand.hbm [shape: f32[4,256], index: 2, kind: input, shape index: {}]
  %s3 = inlined_call_operand.hbm [shape: f32[4,8,128], index: 3, kind: input, shape index: {}]
  %s4 = inlined_call_operand.hbm [shape: f32[4,8,128], index: 4, kind: output, shape index: {}]
  %s5 = sld [smem:[#allocation0]]
  $region42: #{tpu_custom_call.1} parent=0
    _
  %s7 = ssub.s32 1, %s5
  %s8 = scalar_select 0, %s7, %s5
  $region1: #{tpu_custom_call.1} parent=0
    #allocation2 [shape = 'u8[16384]{0}', space=vmem, size = 0x4000, scoped, tag = 'input window, operand 0, single buffered']
    #allocation3 [shape = 's32[1]{0}', space=sflag, size = 0x4, scoped, tag = 'scoped memory for tpu_custom_call.1']
    #allocation4 [shape = 's32[1]{0}', space=sflag, size = 0x4, scoped, tag = 'scoped memory for tpu_custom_call.1']
    #allocation5 [shape = 'u8[131072]{0}', space=vmem, size = 0x20000, scoped, tag = 'input window, operand 1, single buffered']
    #allocation6 [shape = 's32[1]{0}', space=sflag, size = 0x4, scoped, tag = 'scoped memory for tpu_custom_call.1']
    #allocation7 [shape = 'u8[4096]{0}', space=vmem, size = 0x1000, scoped, tag = 'input window, operand 2, single buffered']
    #allocation8 [shape = 'u8[16384]{0}', space=vmem, size = 0x4000, scoped, tag = 'input window, operand 3, single buffered']
    #allocation9 [shape = 's32[1]{0}', space=sflag, size = 0x4, scoped, tag = 'scoped memory for tpu_custom_call.1']
    #allocation10 [shape = 'u8[16384]{0}', space=vmem, size = 0x4000, scoped, tag = 'output window, operand 0, single buffered']
    %9 = vsyncpa [#allocation3], 0
    %10 = vsyncpa [#allocation6], 0
    %11 = vsyncpa [#allocation9], 0
    %12 = vsyncpa [#allocation4], 0
    // Predicated region
    $region2: #{tpu_custom_call.1} parent=1 // pred_check
      _
    $region3: #{tpu_custom_call.1} parent=1 // pred_check_branch
      %14 = sbr.rel (0) target = $region5
    $region4: #{tpu_custom_call.1} parent=1 // pred_region
      %s16 = ssub.s32 512, 512
      %17 = vsyncadd [#allocation3], %s16
      %s18 = sshll.u32 [#allocation2], 4
      %s19 = int_to_ptr.vmem [resolvable:$true] %s18
      %24 = dma.hbm_to_vmem [thread:$0]  %s0, 512, %s19, [#allocation3], 128, 128, 8
    $region5: #{tpu_custom_call.1} parent=1 // pred_fallthru
      _
    // Predicated region
    $region6: #{tpu_custom_call.1} parent=1 // pred_check
      _
    $region7: #{tpu_custom_call.1} parent=1 // pred_check_branch
      %26 = sbr.rel (0) target = $region9
    $region8: #{tpu_custom_call.1} parent=1 // pred_region
      %s28 = ssub.s32 4096, 4096
      %29 = vsyncadd [#allocation6], %s28
      %s30 = sshll.u32 [#allocation5], 4
      %s31 = int_to_ptr.vmem [resolvable:$true] %s30
      %36 = dma.hbm_to_vmem [thread:$0]  %s1, 4096, %s31, [#allocation6], 256, 256, 16
    $region9: #{tpu_custom_call.1} parent=1 // pred_fallthru
      _
    // Predicated region
    $region10: #{tpu_custom_call.1} parent=1 // pred_check
      _
    $region11: #{tpu_custom_call.1} parent=1 // pred_check_branch
      %38 = sbr.rel (0) target = $region13
    $region12: #{tpu_custom_call.1} parent=1 // pred_region
      %s40 = ssub.s32 128, 128
      %41 = vsyncadd [#allocation6], %s40
      %s43 = sshll.u32 [#allocation7], 4
      %s44 = int_to_ptr.vmem [resolvable:$true] %s43
      %46 = dma.hbm_to_vmem [thread:$0]  %s2, 128, %s44, [#allocation6]
    $region13: #{tpu_custom_call.1} parent=1 // pred_fallthru
      _
    // Predicated region
    $region14: #{tpu_custom_call.1} parent=1 // pred_check
      _
    $region15: #{tpu_custom_call.1} parent=1 // pred_check_branch
      %48 = sbr.rel (0) target = $region17
    $region16: #{tpu_custom_call.1} parent=1 // pred_region
      %s50 = ssub.s32 512, 512
      %51 = vsyncadd [#allocation9], %s50
      %s52 = sshll.u32 [#allocation8], 4
      %s53 = int_to_ptr.vmem [resolvable:$true] %s52
      %58 = dma.hbm_to_vmem [thread:$0]  %s3, 512, %s53, [#allocation9], 128, 128, 8
    $region17: #{tpu_custom_call.1} parent=1 // pred_fallthru
      _
    // Predicated region
    $region18: #{tpu_custom_call.1} parent=1 // pred_check
      _
    $region19: #{tpu_custom_call.1} parent=1 // pred_check_branch
      %60 = sbr.rel (0) target = $region21
    $region20: #{tpu_custom_call.1} parent=1 // pred_region
      %61 = dma.done [#allocation3], 512
    $region21: #{tpu_custom_call.1} parent=1 // pred_fallthru
      _
    // Predicated region
    $region22: #{tpu_custom_call.1} parent=1 // pred_check
      _
    $region23: #{tpu_custom_call.1} parent=1 // pred_check_branch
      %63 = sbr.rel (0) target = $region25
    $region24: #{tpu_custom_call.1} parent=1 // pred_region
      %64 = dma.done [#allocation6], 4096
    $region25: #{tpu_custom_call.1} parent=1 // pred_fallthru
      _
    // Predicated region
    $region26: #{tpu_custom_call.1} parent=1 // pred_check
      _
    $region27: #{tpu_custom_call.1} parent=1 // pred_check_branch
      %66 = sbr.rel (0) target = $region29
    $region28: #{tpu_custom_call.1} parent=1 // pred_region
      %67 = dma.done [#allocation6], 128
    $region29: #{tpu_custom_call.1} parent=1 // pred_fallthru
      _
    // Predicated region
    $region30: #{tpu_custom_call.1} parent=1 // pred_check
      _
    $region31: #{tpu_custom_call.1} parent=1 // pred_check_branch
      %69 = sbr.rel (0) target = $region33
    $region32: #{tpu_custom_call.1} parent=1 // pred_region
      %70 = dma.done [#allocation9], 512
    $region33: #{tpu_custom_call.1} parent=1 // pred_fallthru
      _
    %v71 = vld [vmem:[#allocation2] sm:$0xff]
    %v72 = vld [vmem:[#allocation2 + $0x8] sm:$0xff]
    %v73 = vld [vmem:[#allocation2 + $0x10] sm:$0xff]
    %v74 = vld [vmem:[#allocation2 + $0x18] sm:$0xff]
    %v75 = vld [vmem:[#allocation5] sm:$0xff]
    %v76 = vld [vmem:[#allocation5 + $0x8] sm:$0xff]
    %v77 = vld [vmem:[#allocation5 + $0x10] sm:$0xff]
    %v78 = vld [vmem:[#allocation5 + $0x18] sm:$0xff]
    %v79 = vld [vmem:[#allocation5 + $0x20] sm:$0xff]
    %v80 = vld [vmem:[#allocation5 + $0x28] sm:$0xff]
    %v81 = vld [vmem:[#allocation5 + $0x30] sm:$0xff]
    %v82 = vld [vmem:[#allocation5 + $0x38] sm:$0xff]
    %v83 = vld [vmem:[#allocation5 + $0x40] sm:$0xff]
    %v84 = vld [vmem:[#allocation5 + $0x48] sm:$0xff]
    %v85 = vld [vmem:[#allocation5 + $0x50] sm:$0xff]
    %v86 = vld [vmem:[#allocation5 + $0x58] sm:$0xff]
    %v87 = vld [vmem:[#allocation5 + $0x60] sm:$0xff]
    %v88 = vld [vmem:[#allocation5 + $0x68] sm:$0xff]
    %v89 = vld [vmem:[#allocation5 + $0x70] sm:$0xff]
    %v90 = vld [vmem:[#allocation5 + $0x78] sm:$0xff]
    %v91 = vld [vmem:[#allocation5 + $0x80] sm:$0xff]
    %v92 = vld [vmem:[#allocation5 + $0x88] sm:$0xff]
    %v93 = vld [vmem:[#allocation5 + $0x90] sm:$0xff]
    %v94 = vld [vmem:[#allocation5 + $0x98] sm:$0xff]
    %v95 = vld [vmem:[#allocation5 + $0xa0] sm:$0xff]
    %v96 = vld [vmem:[#allocation5 + $0xa8] sm:$0xff]
    %v97 = vld [vmem:[#allocation5 + $0xb0] sm:$0xff]
    %v98 = vld [vmem:[#allocation5 + $0xb8] sm:$0xff]
    %v99 = vld [vmem:[#allocation5 + $0xc0] sm:$0xff]
    %v100 = vld [vmem:[#allocation5 + $0xc8] sm:$0xff]
    %v101 = vld [vmem:[#allocation5 + $0xd0] sm:$0xff]
    %v102 = vld [vmem:[#allocation5 + $0xd8] sm:$0xff]
    %v103 = vld [vmem:[#allocation5 + $0xe0] sm:$0xff]
    %v104 = vld [vmem:[#allocation5 + $0xe8] sm:$0xff]
    %v105 = vld [vmem:[#allocation5 + $0xf0] sm:$0xff]
    %v106 = vld [vmem:[#allocation5 + $0xf8] sm:$0xff]
    %v107 = vld [vmem:[#allocation7] sm:$0xff]
    %v110 = vunpack.c.l.s4 1966171168
    %v111 = vunpack.c.0.s8 %v110
    %v112 = vlaneseq
    %v113 = vshrl.u32 %v112, 7
    %v114 = vsub.s32 %v111, %v113
    %v115 = vrot.slane %v107, %v114
    %v116 = vcombine.high %v115, %v115
    %v118 = vunpack.c.l.s4 1966171168
    %v119 = vunpack.c.0.s8 %v118
    %v120 = vlaneseq
    %v121 = vshrl.u32 %v120, 7
    %v122 = vsub.s32 %v119, %v121
    %v123 = vrot.slane %v115, %v122
    %v125 = vunpack.c.l.s4 1966171168
    %v126 = vunpack.c.0.s8 %v125
    %v127 = vlaneseq
    %v128 = vshrl.u32 %v127, 7
    %v129 = vsub.s32 %v126, %v128
    %v130 = vrot.slane %v116, %v129
    %v131 = vcombine.high %v123, %v123
    %v132 = vcombine.high %v130, %v130
    %v133 = vlaneseq
    %v134 = vshrl.u32 %v133, 7
    %v135 = vsub.s32 0, %v134
    %v136 = vrot.slane %v123, %v135
    %v137 = vlaneseq
    %v138 = vshrl.u32 %v137, 7
    %v139 = vsub.s32 1, %v138
    %v140 = vrot.slane %v123, %v139
    %v141 = vlaneseq
    %v142 = vshrl.u32 %v141, 7
    %v143 = vsub.s32 0, %v142
    %v144 = vrot.slane %v130, %v143
    %v145 = vlaneseq
    %v146 = vshrl.u32 %v145, 7
    %v147 = vsub.s32 1, %v146
    %v148 = vrot.slane %v130, %v147
    %v149 = vlaneseq
    %v150 = vshrl.u32 %v149, 7
    %v151 = vsub.s32 0, %v150
    %v152 = vrot.slane %v131, %v151
    %v153 = vlaneseq
    %v154 = vshrl.u32 %v153, 7
    %v155 = vsub.s32 1, %v154
    %v156 = vrot.slane %v131, %v155
    %v157 = vlaneseq
    %v158 = vshrl.u32 %v157, 7
    %v159 = vsub.s32 0, %v158
    %v160 = vrot.slane %v132, %v159
    %v161 = vlaneseq
    %v162 = vshrl.u32 %v161, 7
    %v163 = vsub.s32 1, %v162
    %v164 = vrot.slane %v132, %v163
    %vm173 = vcmask 261120
    %v175 = vsel %vm173, %v71, 0
    %177 = vmatprep.subr.mxu0 %v76
    %178 = vmatpush1.msra.mxu0 %v75
    %179 = vmatprep.subr.mxu0 %v78
    %180 = vmatpush1.msra.mxu0 %v77
    %181 = vmatprep.subr.mxu0 %v80
    %182 = vmatpush1.msra.mxu0 %v79
    %183 = vmatprep.subr.mxu0 %v82
    %184 = vmatpush1.msra.mxu0 %v81
    %185 = vmatprep.subr.mxu0 0.0
    %186 = vmatpush1.msra.mxu0 0.0
    %187 = vmatprep.subr.mxu0 0.0
    %188 = vmatpush1.msra.mxu0 0.0
    %189 = vmatprep.subr.mxu0 0.0
    %190 = vmatpush1.msra.mxu0 0.0
    %191 = vmatprep.subr.mxu0 0.0
    %192 = vmatpush1.msra.mxu0 0.0
    %193 = vmatprep.subr.mxu0 0.0
    %194 = vmatpush1.msra.mxu0 0.0
    %195 = vmatprep.subr.mxu0 0.0
    %196 = vmatpush1.msra.mxu0 0.0
    %197 = vmatprep.subr.mxu0 0.0
    %198 = vmatpush1.msra.mxu0 0.0
    %199 = vmatprep.subr.mxu0 0.0
    %200 = vmatpush1.msra.mxu0 0.0
    %201 = vmatprep.subr.mxu0 0.0
    %202 = vmatpush1.msra.mxu0 0.0
    %203 = vmatprep.subr.mxu0 0.0
    %204 = vmatpush1.msra.mxu0 0.0
    %205 = vmatprep.subr.mxu0 0.0
    %206 = vmatpush1.msra.mxu0 0.0
    %207 = vmatprep.subr.mxu0 0.0
    %208 = vmatpush1.msra.mxu0 0.0
    %209 = vmatprep.subr.mxu0 0.0
    %210 = vmatpush1.msra.mxu0 0.0
    %211 = vmatprep.subr.mxu0 0.0
    %212 = vmatpush1.msra.mxu0 0.0
    %213 = vmatprep.subr.mxu0 0.0
    %214 = vmatpush1.msra.mxu0 0.0
    %215 = vmatprep.subr.mxu0 0.0
    %216 = vmatpush1.msra.mxu0 0.0
    %217 = vmatprep.subr.mxu0 0.0
    %218 = vmatpush1.msra.mxu0 0.0
    %219 = vmatprep.subr.mxu0 0.0
    %220 = vmatpush1.msra.mxu0 0.0
    %221 = vmatprep.subr.mxu0 0.0
    %222 = vmatpush1.msra.mxu0 0.0
    %223 = vmatprep.subr.mxu0 0.0
    %224 = vmatpush1.msra.mxu0 0.0
    %225 = vmatprep.subr.mxu0 0.0
    %226 = vmatpush1.msra.mxu0 0.0
    %227 = vmatprep.subr.mxu0 0.0
    %228 = vmatpush1.msra.mxu0 0.0
    %229 = vmatprep.subr.mxu0 0.0
    %230 = vmatpush1.msra.mxu0 0.0
    %231 = vmatprep.subr.mxu0 0.0
    %232 = vmatpush1.msra.mxu0 0.0
    %233 = vmatprep.subr.mxu0 0.0
    %234 = vmatpush1.msra.mxu0 0.0
    %235 = vmatprep.subr.mxu0 0.0
    %236 = vmatpush1.msra.mxu0 0.0
    %237 = vmatprep.subr.mxu0 0.0
    %238 = vmatpush1.msra.mxu0 0.0
    %239 = vmatprep.subr.mxu0 0.0
    %240 = vmatpush1.msra.mxu0 0.0
    %241 = vmatprep.mubr.f32.mxu0 0.0
    %242 = vmatmul.mubr.f32.gmra.mrb[0].mxu0 %v175
    %v243 = vpop.f32.mrb[0].mxu0
    %v244 = vadd.f32 %v136, %v243
    %v245 = vpop.f32.mrb[0].mxu0
    %v246 = vadd.f32 %v140, %v245
    %247 = vdwg.mxu0
    %v249 = vsel %vm173, %v72, 0
    %251 = vmatprep.subr.mxu0 %v84
    %252 = vmatpush1.msra.mxu0 %v83
    %253 = vmatprep.subr.mxu0 %v86
    %254 = vmatpush1.msra.mxu0 %v85
    %255 = vmatprep.subr.mxu0 %v88
    %256 = vmatpush1.msra.mxu0 %v87
    %257 = vmatprep.subr.mxu0 %v90
    %258 = vmatpush1.msra.mxu0 %v89
    %259 = vmatprep.subr.mxu0 0.0
    %260 = vmatpush1.msra.mxu0 0.0
    %261 = vmatprep.subr.mxu0 0.0
    %262 = vmatpush1.msra.mxu0 0.0
    %263 = vmatprep.subr.mxu0 0.0
    %264 = vmatpush1.msra.mxu0 0.0
    %265 = vmatprep.subr.mxu0 0.0
    %266 = vmatpush1.msra.mxu0 0.0
    %267 = vmatprep.subr.mxu0 0.0
    %268 = vmatpush1.msra.mxu0 0.0
    %269 = vmatprep.subr.mxu0 0.0
    %270 = vmatpush1.msra.mxu0 0.0
    %271 = vmatprep.subr.mxu0 0.0
    %272 = vmatpush1.msra.mxu0 0.0
    %273 = vmatprep.subr.mxu0 0.0
    %274 = vmatpush1.msra.mxu0 0.0
    %275 = vmatprep.subr.mxu0 0.0
    %276 = vmatpush1.msra.mxu0 0.0
    %277 = vmatprep.subr.mxu0 0.0
    %278 = vmatpush1.msra.mxu0 0.0
    %279 = vmatprep.subr.mxu0 0.0
    %280 = vmatpush1.msra.mxu0 0.0
    %281 = vmatprep.subr.mxu0 0.0
    %282 = vmatpush1.msra.mxu0 0.0
    %283 = vmatprep.subr.mxu0 0.0
    %284 = vmatpush1.msra.mxu0 0.0
    %285 = vmatprep.subr.mxu0 0.0
    %286 = vmatpush1.msra.mxu0 0.0
    %287 = vmatprep.subr.mxu0 0.0
    %288 = vmatpush1.msra.mxu0 0.0
    %289 = vmatprep.subr.mxu0 0.0
    %290 = vmatpush1.msra.mxu0 0.0
    %291 = vmatprep.subr.mxu0 0.0
    %292 = vmatpush1.msra.mxu0 0.0
    %293 = vmatprep.subr.mxu0 0.0
    %294 = vmatpush1.msra.mxu0 0.0
    %295 = vmatprep.subr.mxu0 0.0
    %296 = vmatpush1.msra.mxu0 0.0
    %297 = vmatprep.subr.mxu0 0.0
    %298 = vmatpush1.msra.mxu0 0.0
    %299 = vmatprep.subr.mxu0 0.0
    %300 = vmatpush1.msra.mxu0 0.0
    %301 = vmatprep.subr.mxu0 0.0
    %302 = vmatpush1.msra.mxu0 0.0
    %303 = vmatprep.subr.mxu0 0.0
    %304 = vmatpush1.msra.mxu0 0.0
    %305 = vmatprep.subr.mxu0 0.0
    %306 = vmatpush1.msra.mxu0 0.0
    %307 = vmatprep.subr.mxu0 0.0
    %308 = vmatpush1.msra.mxu0 0.0
    %309 = vmatprep.subr.mxu0 0.0
    %310 = vmatpush1.msra.mxu0 0.0
    %311 = vmatprep.subr.mxu0 0.0
    %312 = vmatpush1.msra.mxu0 0.0
    %313 = vmatprep.subr.mxu0 0.0
    %314 = vmatpush1.msra.mxu0 0.0
    %315 = vmatprep.mubr.f32.mxu0 0.0
    %316 = vmatmul.mubr.f32.gmra.mrb[0].mxu0 %v249
    %v317 = vpop.f32.mrb[0].mxu0
    %v318 = vadd.f32 %v144, %v317
    %v319 = vpop.f32.mrb[0].mxu0
    %v320 = vadd.f32 %v148, %v319
    %321 = vdwg.mxu0
    %v323 = vsel %vm173, %v73, 0
    %325 = vmatprep.subr.mxu0 %v92
    %326 = vmatpush1.msra.mxu0 %v91
    %327 = vmatprep.subr.mxu0 %v94
    %328 = vmatpush1.msra.mxu0 %v93
    %329 = vmatprep.subr.mxu0 %v96
    %330 = vmatpush1.msra.mxu0 %v95
    %331 = vmatprep.subr.mxu0 %v98
    %332 = vmatpush1.msra.mxu0 %v97
    %333 = vmatprep.subr.mxu0 0.0
    %334 = vmatpush1.msra.mxu0 0.0
    %335 = vmatprep.subr.mxu0 0.0
    %336 = vmatpush1.msra.mxu0 0.0
    %337 = vmatprep.subr.mxu0 0.0
    %338 = vmatpush1.msra.mxu0 0.0
    %339 = vmatprep.subr.mxu0 0.0
    %340 = vmatpush1.msra.mxu0 0.0
    %341 = vmatprep.subr.mxu0 0.0
    %342 = vmatpush1.msra.mxu0 0.0
    %343 = vmatprep.subr.mxu0 0.0
    %344 = vmatpush1.msra.mxu0 0.0
    %345 = vmatprep.subr.mxu0 0.0
    %346 = vmatpush1.msra.mxu0 0.0
    %347 = vmatprep.subr.mxu0 0.0
    %348 = vmatpush1.msra.mxu0 0.0
    %349 = vmatprep.subr.mxu0 0.0
    %350 = vmatpush1.msra.mxu0 0.0
    %351 = vmatprep.subr.mxu0 0.0
    %352 = vmatpush1.msra.mxu0 0.0
    %353 = vmatprep.subr.mxu0 0.0
    %354 = vmatpush1.msra.mxu0 0.0
    %355 = vmatprep.subr.mxu0 0.0
    %356 = vmatpush1.msra.mxu0 0.0
    %357 = vmatprep.subr.mxu0 0.0
    %358 = vmatpush1.msra.mxu0 0.0
    %359 = vmatprep.subr.mxu0 0.0
    %360 = vmatpush1.msra.mxu0 0.0
    %361 = vmatprep.subr.mxu0 0.0
    %362 = vmatpush1.msra.mxu0 0.0
    %363 = vmatprep.subr.mxu0 0.0
    %364 = vmatpush1.msra.mxu0 0.0
    %365 = vmatprep.subr.mxu0 0.0
    %366 = vmatpush1.msra.mxu0 0.0
    %367 = vmatprep.subr.mxu0 0.0
    %368 = vmatpush1.msra.mxu0 0.0
    %369 = vmatprep.subr.mxu0 0.0
    %370 = vmatpush1.msra.mxu0 0.0
    %371 = vmatprep.subr.mxu0 0.0
    %372 = vmatpush1.msra.mxu0 0.0
    %373 = vmatprep.subr.mxu0 0.0
    %374 = vmatpush1.msra.mxu0 0.0
    %375 = vmatprep.subr.mxu0 0.0
    %376 = vmatpush1.msra.mxu0 0.0
    %377 = vmatprep.subr.mxu0 0.0
    %378 = vmatpush1.msra.mxu0 0.0
    %379 = vmatprep.subr.mxu0 0.0
    %380 = vmatpush1.msra.mxu0 0.0
    %381 = vmatprep.subr.mxu0 0.0
    %382 = vmatpush1.msra.mxu0 0.0
    %383 = vmatprep.subr.mxu0 0.0
    %384 = vmatpush1.msra.mxu0 0.0
    %385 = vmatprep.subr.mxu0 0.0
    %386 = vmatpush1.msra.mxu0 0.0
    %387 = vmatprep.subr.mxu0 0.0
    %388 = vmatpush1.msra.mxu0 0.0
    %389 = vmatprep.mubr.f32.mxu0 0.0
    %390 = vmatmul.mubr.f32.gmra.mrb[0].mxu0 %v323
    %v391 = vpop.f32.mrb[0].mxu0
    %v392 = vadd.f32 %v152, %v391
    %v393 = vpop.f32.mrb[0].mxu0
    %v394 = vadd.f32 %v156, %v393
    %395 = vdwg.mxu0
    %v397 = vsel %vm173, %v74, 0
    %399 = vmatprep.subr.mxu0 %v100
    %400 = vmatpush1.msra.mxu0 %v99
    %401 = vmatprep.subr.mxu0 %v102
    %402 = vmatpush1.msra.mxu0 %v101
    %403 = vmatprep.subr.mxu0 %v104
    %404 = vmatpush1.msra.mxu0 %v103
    %405 = vmatprep.subr.mxu0 %v106
    %406 = vmatpush1.msra.mxu0 %v105
    %407 = vmatprep.subr.mxu0 0.0
    %408 = vmatpush1.msra.mxu0 0.0
    %409 = vmatprep.subr.mxu0 0.0
    %410 = vmatpush1.msra.mxu0 0.0
    %411 = vmatprep.subr.mxu0 0.0
    %412 = vmatpush1.msra.mxu0 0.0
    %413 = vmatprep.subr.mxu0 0.0
    %414 = vmatpush1.msra.mxu0 0.0
    %415 = vmatprep.subr.mxu0 0.0
    %416 = vmatpush1.msra.mxu0 0.0
    %417 = vmatprep.subr.mxu0 0.0
    %418 = vmatpush1.msra.mxu0 0.0
    %419 = vmatprep.subr.mxu0 0.0
    %420 = vmatpush1.msra.mxu0 0.0
    %421 = vmatprep.subr.mxu0 0.0
    %422 = vmatpush1.msra.mxu0 0.0
    %423 = vmatprep.subr.mxu0 0.0
    %424 = vmatpush1.msra.mxu0 0.0
    %425 = vmatprep.subr.mxu0 0.0
    %426 = vmatpush1.msra.mxu0 0.0
    %427 = vmatprep.subr.mxu0 0.0
    %428 = vmatpush1.msra.mxu0 0.0
    %429 = vmatprep.subr.mxu0 0.0
    %430 = vmatpush1.msra.mxu0 0.0
    %431 = vmatprep.subr.mxu0 0.0
    %432 = vmatpush1.msra.mxu0 0.0
    %433 = vmatprep.subr.mxu0 0.0
    %434 = vmatpush1.msra.mxu0 0.0
    %435 = vmatprep.subr.mxu0 0.0
    %436 = vmatpush1.msra.mxu0 0.0
    %437 = vmatprep.subr.mxu0 0.0
    %438 = vmatpush1.msra.mxu0 0.0
    %439 = vmatprep.subr.mxu0 0.0
    %440 = vmatpush1.msra.mxu0 0.0
    %441 = vmatprep.subr.mxu0 0.0
    %442 = vmatpush1.msra.mxu0 0.0
    %443 = vmatprep.subr.mxu0 0.0
    %444 = vmatpush1.msra.mxu0 0.0
    %445 = vmatprep.subr.mxu0 0.0
    %446 = vmatpush1.msra.mxu0 0.0
    %447 = vmatprep.subr.mxu0 0.0
    %448 = vmatpush1.msra.mxu0 0.0
    %449 = vmatprep.subr.mxu0 0.0
    %450 = vmatpush1.msra.mxu0 0.0
    %451 = vmatprep.subr.mxu0 0.0
    %452 = vmatpush1.msra.mxu0 0.0
    %453 = vmatprep.subr.mxu0 0.0
    %454 = vmatpush1.msra.mxu0 0.0
    %455 = vmatprep.subr.mxu0 0.0
    %456 = vmatpush1.msra.mxu0 0.0
    %457 = vmatprep.subr.mxu0 0.0
    %458 = vmatpush1.msra.mxu0 0.0
    %459 = vmatprep.subr.mxu0 0.0
    %460 = vmatpush1.msra.mxu0 0.0
    %461 = vmatprep.subr.mxu0 0.0
    %462 = vmatpush1.msra.mxu0 0.0
    %463 = vmatprep.mubr.f32.mxu0 0.0
    %464 = vmatmul.mubr.f32.gmra.mrb[0].mxu0 %v397
    %v465 = vpop.f32.mrb[0].mxu0
    %v466 = vadd.f32 %v160, %v465
    %v467 = vpop.f32.mrb[0].mxu0
    %v468 = vadd.f32 %v164, %v467
    %469 = vdwg.mxu0
    %v470 = vmul.f32 %v246, 0.5
    %v471 = vmul.f32 %v320, 0.5
    %v472 = vmul.f32 %v394, 0.5
    %v473 = vmul.f32 %v468, 0.5
    %v474 = vmul.f32 %v470, 1.442695
    %v475 = vpow.pop %v474
    %v476 = vmul.f32 %v471, 1.442695
    %v477 = vpow.pop %v476
    %v478 = vmul.f32 %v472, 1.442695
    %v479 = vpow.pop %v478
    %v480 = vmul.f32 %v473, 1.442695
    %v481 = vpow.pop %v480
    %v482 = vld [vmem:[#allocation8] sm:$0xff]
    %v483 = vld [vmem:[#allocation8 + $0x8] sm:$0xff]
    %v484 = vld [vmem:[#allocation8 + $0x10] sm:$0xff]
    %v485 = vld [vmem:[#allocation8 + $0x18] sm:$0xff]
    %v486 = vmul.f32 %v475, %v482
    %v487 = vmul.f32 %v477, %v483
    %v488 = vmul.f32 %v479, %v484
    %v489 = vmul.f32 %v481, %v485
    %v490 = vadd.f32 %v244, %v486
    %v491 = vadd.f32 %v318, %v487
    %v492 = vadd.f32 %v392, %v488
    %v493 = vadd.f32 %v466, %v489
    %494 = vst [vmem:[#allocation10] sm:$0xff] %v490
    %495 = vst [vmem:[#allocation10 + $0x8] sm:$0xff] %v491
    %496 = vst [vmem:[#allocation10 + $0x10] sm:$0xff] %v492
    %497 = vst [vmem:[#allocation10 + $0x18] sm:$0xff] %v493
    // Predicated region
    $region34: #{tpu_custom_call.1} parent=1 // pred_check
      _
    $region35: #{tpu_custom_call.1} parent=1 // pred_check_branch
      %499 = sbr.rel (0) target = $region37
    $region36: #{tpu_custom_call.1} parent=1 // pred_region
      %s501 = ssub.s32 512, 512
      %502 = vsyncadd [#allocation4], %s501
      %s503 = sshll.u32 [#allocation10], 4
      %s504 = int_to_ptr.vmem [resolvable:$true] %s503
      %509 = dma.vmem_to_hbm [thread:$0]  %s504, 512, %s4, [#allocation4], 128, 128, 8
    $region37: #{tpu_custom_call.1} parent=1 // pred_fallthru
      _
    // Predicated region
    $region38: #{tpu_custom_call.1} parent=1 // pred_check
      _
    $region39: #{tpu_custom_call.1} parent=1 // pred_check_branch
      %511 = sbr.rel (0) target = $region41
    $region40: #{tpu_custom_call.1} parent=1 // pred_region
      %512 = dma.done [#allocation4], 512
    $region41: #{tpu_custom_call.1} parent=1 // pred_fallthru
      _
    %513 = vsyncpa [#allocation3], 1
    %514 = vsyncpa [#allocation6], 1
    %515 = vsyncpa [#allocation9], 1
    %516 = vsyncpa [#allocation4], 1

</llo_original>
